<compile_context>
chip_gen: v7x
topology: tpu7x:2x2x1
jax: 0.10.0
libtpu: 0.0.40
codegen_flags: <defaults>
</compile_context>

<pallas_src>
import functools

import jax
import jax.numpy as jnp
from jax import lax
from jax.experimental import pallas as pl
from jax.experimental.pallas import tpu as pltpu

EPS = 1e-5


def _vmem_limit_bytes():
    """Generation-aware scoped-VMEM limit (~5/8 of physical, clamped)."""
    cap = 64 * 1024 * 1024
    try:
        info = pltpu.get_tpu_info()
        cap = int(getattr(info, "vmem_capacity_bytes", cap))
    except Exception:
        pass
    return int(max(32 * 1024 * 1024, min(cap * 5 // 8, 96 * 1024 * 1024)))


def _auto_tile_b(osize, asize, vmem_limit):
    """Batch-tile rows for the streaming path, sized from the VMEM budget."""
    # ~bytes/row resident per step: double-buffered f32 x/out blocks plus
    # f32 + bf16 copies of h1 (64) / h2 (32) temporaries, with headroom.
    per_row = 8 * osize + 8 * asize + 640
    t = int((vmem_limit // 2) // per_row)
    return int(max(1024, min(32768, (t // 256) * 256)))


# ---------------------------------------------------------------------------
# Small/medium-batch path: single fused kernel, whole batch resident in VMEM.
# ---------------------------------------------------------------------------
def _fused_kernel(x_ref, w1_ref, b1_ref, gamma_ref, beta_ref,
                  w2_ref, b2_ref, w3_ref, b3_ref, out_ref):
    h1 = jnp.dot(x_ref[...].astype(w1_ref.dtype), w1_ref[...],
                 preferred_element_type=jnp.float32)
    h1 = jnp.maximum(h1 + b1_ref[...], 0.0)                        # (B, 64) f32

    # BatchNorm1d (training mode), exact two-pass variance (no cancellation).
    mean = jnp.mean(h1, axis=0, keepdims=True)                     # (1, 64)
    d = h1 - mean
    var = jnp.mean(d * d, axis=0, keepdims=True)                   # biased var
    scale = gamma_ref[...] * lax.rsqrt(var + EPS)                  # EUP rsqrt
    h1n = d * scale + beta_ref[...]

    h2 = jnp.dot(h1n.astype(w2_ref.dtype), w2_ref[...],
                 preferred_element_type=jnp.float32)
    h2 = jnp.maximum(h2 + b2_ref[...], 0.0)                        # (B, 32)

    out_ref[...] = (jnp.dot(h2.astype(w3_ref.dtype), w3_ref[...],
                            preferred_element_type=jnp.float32)
                    + b3_ref[...])                                 # (B, asize)


# ---------------------------------------------------------------------------
# Streaming path, pass 1: shifted partial BN statistics per parallel slice.
# Grid = (NPAR=2 "parallel", tiles "arbitrary"); on v7x both TCs contribute.
# Partial sums accumulate directly into resident output blocks (one per slice).
# ---------------------------------------------------------------------------
def _stats_kernel(x_ref, w1_ref, b1_ref, s1_ref, s2_ref, c_ref,
                  *, batch, tile_b, tiles_per_par):
    p = pl.program_id(0)
    k = pl.program_id(1)

    h1 = jnp.dot(x_ref[...].astype(w1_ref.dtype), w1_ref[...],
                 preferred_element_type=jnp.float32)
    h1 = jnp.maximum(h1 + b1_ref[...], 0.0)                        # (tile_b, 64)

    # Mask rows beyond the true batch (covers both the ragged last tile's
    # boundary-block padding and the clamped "virtual" overhang tile).
    row = (p * tiles_per_par + k) * tile_b + lax.broadcasted_iota(
        jnp.int32, (tile_b, 1), 0)
    valid = row < batch
    h1 = jnp.where(valid, h1, 0.0)

    @pl.when(k == 0)
    def _():
        # Per-slice shift c ~= column mean of the slice's first tile; keeps the
        # accumulated sums small so sumsq - sum^2/n does not cancel badly.
        nvalid = jnp.maximum(
            jnp.minimum(batch - p * tiles_per_par * tile_b, tile_b), 1
        ).astype(jnp.float32)
        c_ref[...] = (jnp.sum(h1, axis=0) / nvalid)[None, None, :]
        s1_ref[...] = jnp.zeros_like(s1_ref)
        s2_ref[...] = jnp.zeros_like(s2_ref)

    c = c_ref[...][0]                                              # (1, 64)
    d = jnp.where(valid, h1 - c, 0.0)
    s1_ref[...] += jnp.sum(d, axis=0)[None, None, :]
    s2_ref[...] += jnp.sum(d * d, axis=0)[None, None, :]


# ---------------------------------------------------------------------------
# Streaming path, pass 2: fc1+ReLU, (BN-folded) fc2+ReLU, fc3 per batch tile.
# ---------------------------------------------------------------------------
def _apply_kernel(x_ref, w1_ref, b1_ref, w2_ref, b2_ref, w3_ref, b3_ref,
                  out_ref):
    h1 = jnp.dot(x_ref[...].astype(w1_ref.dtype), w1_ref[...],
                 preferred_element_type=jnp.float32)
    h1 = jnp.maximum(h1 + b1_ref[...], 0.0)
    # BN folded into w2/b2 outside the kernel -> no per-element scale/shift.
    h2 = jnp.dot(h1.astype(w2_ref.dtype), w2_ref[...],
                 preferred_element_type=jnp.float32)
    h2 = jnp.maximum(h2 + b2_ref[...], 0.0)
    out_ref[...] = (jnp.dot(h2.astype(w3_ref.dtype), w3_ref[...],
                            preferred_element_type=jnp.float32)
                    + b3_ref[...])


def qnetwork_forward(x, params, *, tile_b=None, use_bf16=True):
    """QNetwork forward. x: (B, osize) f32; params: dict with (in, out) weights."""
    B, osize = x.shape
    h1d = params["w1"].shape[1]
    asize = params["w3"].shape[1]

    w_dtype = jnp.bfloat16 if use_bf16 else jnp.float32
    # Only the (tiny) weights change dtype in the wrapper; x stays f32 in HBM.
    w1 = params["w1"].astype(w_dtype)
    w3 = params["w3"].astype(w_dtype)
    b1, b2, b3 = params["b1"], params["b2"], params["b3"]          # f32
    gamma, beta = params["gamma"], params["beta"]                  # f32

    vmem_limit = _vmem_limit_bytes()

    # ---- path selection: fused single call whenever the whole problem fits ----
    per_row_fused = 6 * osize + 8 * h1d + 6 * 32 + 4 * asize + 16  # ~bytes/row
    fits_fused = B * per_row_fused <= int(0.45 * vmem_limit)
    if tile_b is None:
        use_fused = fits_fused
        tile_b_s = _auto_tile_b(osize, asize, vmem_limit)
    else:
        tile_b_s = max(16, (int(tile_b) // 16) * 16)
        use_fused = (B <= tile_b_s) and fits_fused
        tile_b_s = min(tile_b_s, _auto_tile_b(osize, asize, vmem_limit))

    if use_fused:
        w2 = params["w2"].astype(w_dtype)
        vmem = pl.BlockSpec(memory_space=pltpu.MemorySpace.VMEM)
        return pl.pallas_call(
            _fused_kernel,
            out_shape=jax.ShapeDtypeStruct((B, asize), jnp.float32),
            in_specs=[vmem] * 9,
            out_specs=vmem,
            compiler_params=pltpu.CompilerParams(vmem_limit_bytes=vmem_limit),
        )(x, w1, b1, gamma, beta, w2, b2, w3, b3)

    # ---- streaming path: big batch tiles, weights VMEM-resident, no padding ----
    n_tiles = int(pl.cdiv(B, tile_b_s))
    if n_tiles < 2:                                 # defensive; fused covers this
        tile_b_s = max(16, ((B // 2) // 16) * 16) or 16
        n_tiles = int(pl.cdiv(B, tile_b_s))

    NPAR = 2                                        # engages both v7x TCs; free on v5e/v6e
    tiles_per_par = int(pl.cdiv(n_tiles, NPAR))

    def x_map_p1(p, k):
        # Clamp the (rare) virtual overhang tile of the second slice; its rows
        # are >= B and masked out of the statistics inside the kernel.
        return (jnp.minimum(p * tiles_per_par + k, n_tiles - 1), 0)

    def const2(shape):
        return pl.BlockSpec(shape, lambda p, k: (0, 0))

    part_spec = pl.BlockSpec((1, 1, h1d), lambda p, k: (p, 0, 0))

    # Pass 1: partial (shifted) sums per parallel slice.
    s1, s2, csh = pl.pallas_call(
        functools.partial(_stats_kernel, batch=B, tile_b=tile_b_s,
                          tiles_per_par=tiles_per_par),
        out_shape=(jax.ShapeDtypeStruct((NPAR, 1, h1d), jnp.float32),
                   jax.ShapeDtypeStruct((NPAR, 1, h1d), jnp.float32),
                   jax.ShapeDtypeStruct((NPAR, 1, h1d), jnp.float32)),
        grid=(NPAR, tiles_per_par),
        in_specs=[pl.BlockSpec((tile_b_s, osize), x_map_p1),
                  const2(w1.shape), const2(b1.shape)],
        out_specs=[part_spec, part_spec, part_spec],
        compiler_params=pltpu.CompilerParams(
            dimension_semantics=("parallel", "arbitrary"),
            vmem_limit_bytes=vmem_limit),
    )(x, w1, b1)

    # Tiny XLA combine (Chan/Welford) + BN fold into fc2: w2' = scale*w2,
    # b2' = shift@w2 + b2.  All (64,)/(64,32)-sized, negligible.
    s1 = s1[:, 0, :]; s2 = s2[:, 0, :]; csh = csh[:, 0, :]
    n0 = float(tiles_per_par * tile_b_s)
    n1 = float(B - tiles_per_par * tile_b_s)
    mean0 = csh[0] + s1[0] / n0
    mean1 = csh[1] + s1[1] / n1
    m2_0 = s2[0] - s1[0] * s1[0] / n0
    m2_1 = s2[1] - s1[1] * s1[1] / n1
    delta = mean1 - mean0
    mean = mean0 + delta * (n1 / B)
    var = (m2_0 + m2_1 + delta * delta * (n0 * n1 / B)) / B        # biased var
    scale = gamma.reshape(-1) * lax.rsqrt(var + EPS)               # (64,)
    shift = beta.reshape(-1) - mean * scale                        # (64,)
    w2f = (params["w2"] * scale[:, None]).astype(w_dtype)          # (64, 32)
    b2f = ((shift @ params["w2"]).reshape(1, -1) + b2)             # (1, 32) f32

    def const1(shape):
        return pl.BlockSpec(shape, lambda i: (0, 0))

    # Pass 2: independent batch tiles ("parallel" -> both TCs on v7x).
    out = pl.pallas_call(
        _apply_kernel,
        out_shape=jax.ShapeDtypeStruct((B, asize), jnp.float32),
        grid=(n_tiles,),
        in_specs=[pl.BlockSpec((tile_b_s, osize), lambda i: (i, 0)),
                  const1(w1.shape), const1(b1.shape),
                  const1(w2f.shape), const1(b2f.shape),
                  const1(w3.shape), const1(b3.shape)],
        out_specs=pl.BlockSpec((tile_b_s, asize), lambda i: (i, 0)),
        compiler_params=pltpu.CompilerParams(
            dimension_semantics=("parallel",),
            vmem_limit_bytes=vmem_limit),
    )(x, w1, b1, w2f, b2f, w3, b3)
    return out


def init_params(key, osize, asize):
    """Deterministic synthetic init. Linear weights stored as (in, out)."""
    ks = jax.random.split(key, 6)

    def lin(kw, kb, fan_in, fan_out):
        bound = 1.0 / jnp.sqrt(fan_in)
        w = jax.random.uniform(kw, (fan_in, fan_out), jnp.float32, -bound, bound)
        b = jax.random.uniform(kb, (1, fan_out), jnp.float32, -bound, bound)
        return w, b

    w1, b1 = lin(ks[0], ks[1], osize, 64)
    w2, b2 = lin(ks[2], ks[3], 64, 32)
    w3, b3 = lin(ks[4], ks[5], 32, asize)
    gamma = jnp.ones((1, 64), jnp.float32)
    beta = jnp.zeros((1, 64), jnp.float32)
    return {"w1": w1, "b1": b1, "w2": w2, "b2": b2, "w3": w3, "b3": b3,
            "gamma": gamma, "beta": beta}


def qnetwork_reference(x, p):
    h1 = jnp.maximum(x @ p["w1"] + p["b1"], 0.0)
    mean = jnp.mean(h1, axis=0, keepdims=True)
    var = jnp.mean((h1 - mean) ** 2, axis=0, keepdims=True)
    h1n = (h1 - mean) / jnp.sqrt(var + EPS) * p["gamma"] + p["beta"]
    h2 = jnp.maximum(h1n @ p["w2"] + p["b2"], 0.0)
    return h2 @ p["w3"] + p["b3"]


if __name__ == "__main__":
    OSIZE, ASIZE = 32, 4
    key = jax.random.PRNGKey(0)
    kp, kx1, kx2 = jax.random.split(key, 3)
    params = init_params(kp, OSIZE, ASIZE)

    qnet = jax.jit(qnetwork_forward, static_argnames=("tile_b", "use_bf16"))

    # 1) small batch, fused single-call path, f32 (exact module semantics).
    x_small = jax.random.normal(kx1, (8, OSIZE), jnp.float32)
    ref_s = qnetwork_reference(x_small, params)
    out_f32 = jax.block_until_ready(qnet(x_small, params, use_bf16=False))
    assert out_f32.shape == (8, ASIZE), out_f32.shape
    assert jnp.allclose(out_f32, ref_s, atol=1e-4, rtol=1e-4), \
        f"fused f32 max abs err {jnp.max(jnp.abs(out_f32 - ref_s))}"

    # 2) same path with the default in-kernel bf16 matmuls (looser check).
    out_bf = jax.block_until_ready(qnet(x_small, params))
    assert jnp.allclose(out_bf, ref_s, atol=5e-2, rtol=5e-2), \
        f"fused bf16 max abs err {jnp.max(jnp.abs(out_bf - ref_s))}"

    # 3) streaming two-pass path (forced via small tile_b), ragged B=200, f32.
    x_big = jax.random.normal(kx2, (200, OSIZE), jnp.float32)
    ref_b = qnetwork_reference(x_big, params)
    out_b = jax.block_until_ready(qnet(x_big, params, tile_b=32, use_bf16=False))
    assert out_b.shape == (200, ASIZE), out_b.shape
    assert jnp.allclose(out_b, ref_b, atol=1e-3, rtol=1e-3), \
        f"streaming f32 max abs err {jnp.max(jnp.abs(out_b - ref_b))}"

    # 4) streaming path with default bf16 matmuls (loose check).
    out_bbf = jax.block_until_ready(qnet(x_big, params, tile_b=32))
    assert bool(jnp.all(jnp.isfinite(out_bbf)))
    assert jnp.allclose(out_bbf, ref_b, atol=1e-1, rtol=1e-1), \
        f"streaming bf16 max abs err {jnp.max(jnp.abs(out_bbf - ref_b))}"

    # 5) auto path selection (B=200 fits the VMEM budget -> fused path).
    out_auto = jax.block_until_ready(qnet(x_big, params))
    assert jnp.allclose(out_auto, ref_b, atol=5e-2, rtol=5e-2), \
        f"auto-path max abs err {jnp.max(jnp.abs(out_auto - ref_b))}"

    print("KERNEL_OK")
</pallas_src>

<mosaic_0001>
module attributes {stable_mosaic.version = 11 : i64} {
  func.func @_fused_kernel(%arg0: memref<8x32xf32, #tpu.memory_space<vmem>>, %arg1: memref<32x64xf32, #tpu.memory_space<vmem>>, %arg2: memref<1x64xf32, #tpu.memory_space<vmem>>, %arg3: memref<1x64xf32, #tpu.memory_space<vmem>>, %arg4: memref<1x64xf32, #tpu.memory_space<vmem>>, %arg5: memref<64x32xf32, #tpu.memory_space<vmem>>, %arg6: memref<1x32xf32, #tpu.memory_space<vmem>>, %arg7: memref<32x4xf32, #tpu.memory_space<vmem>>, %arg8: memref<1x4xf32, #tpu.memory_space<vmem>>, %arg9: memref<8x4xf32, #tpu.memory_space<vmem>>) attributes {dimension_semantics = [], scalar_prefetch = 0 : i64, scratch_operands = 0 : i64, tpu.core_type = #tpu.core_type<tc>} {
    %c0 = arith.constant 0 : index
    %c0_0 = arith.constant 0 : index
    %0 = vector.load %arg0[%c0, %c0_0] : memref<8x32xf32, #tpu.memory_space<vmem>>, vector<8x32xf32>
    %c0_1 = arith.constant 0 : index
    %c0_2 = arith.constant 0 : index
    %1 = vector.load %arg1[%c0_1, %c0_2] : memref<32x64xf32, #tpu.memory_space<vmem>>, vector<32x64xf32>
    %cst = arith.constant dense<0.000000e+00> : vector<8x64xf32>
    %2 = tpu.matmul %0, %1, %cst {dimension_numbers = #tpu.dot_dimension_numbers<[1], [0], [0], [1], [0, 0, 1, 1], [], []>} : vector<8x32xf32>, vector<32x64xf32>, vector<8x64xf32> -> vector<8x64xf32>
    %c0_3 = arith.constant 0 : index
    %c0_4 = arith.constant 0 : index
    %3 = vector.load %arg2[%c0_3, %c0_4] : memref<1x64xf32, #tpu.memory_space<vmem>>, vector<1x64xf32>
    %4 = vector.broadcast %3 : vector<1x64xf32> to vector<8x64xf32>
    %5 = arith.addf %2, %4 : vector<8x64xf32>
    %cst_5 = arith.constant 0.000000e+00 : f32
    %6 = vector.broadcast %cst_5 : f32 to vector<8x64xf32>
    %7 = arith.maximumf %5, %6 : vector<8x64xf32>
    %cst_6 = arith.constant dense<0.000000e+00> : vector<64xf32>
    %8 = vector.multi_reduction <add>, %7, %cst_6 [0] : vector<8x64xf32> to vector<64xf32>
    %9 = vector.shape_cast %8 : vector<64xf32> to vector<1x64xf32>
    %cst_7 = arith.constant 8.000000e+00 : f32
    %10 = vector.broadcast %cst_7 : f32 to vector<1x64xf32>
    %11 = arith.divf %9, %10 : vector<1x64xf32>
    %12 = vector.broadcast %11 : vector<1x64xf32> to vector<8x64xf32>
    %13 = arith.subf %7, %12 : vector<8x64xf32>
    %14 = arith.mulf %13, %13 : vector<8x64xf32>
    %cst_8 = arith.constant dense<0.000000e+00> : vector<64xf32>
    %15 = vector.multi_reduction <add>, %14, %cst_8 [0] : vector<8x64xf32> to vector<64xf32>
    %16 = vector.shape_cast %15 : vector<64xf32> to vector<1x64xf32>
    %cst_9 = arith.constant 8.000000e+00 : f32
    %17 = vector.broadcast %cst_9 : f32 to vector<1x64xf32>
    %18 = arith.divf %16, %17 : vector<1x64xf32>
    %c0_10 = arith.constant 0 : index
    %c0_11 = arith.constant 0 : index
    %19 = vector.load %arg3[%c0_10, %c0_11] : memref<1x64xf32, #tpu.memory_space<vmem>>, vector<1x64xf32>
    %cst_12 = arith.constant 9.99999974E-6 : f32
    %20 = vector.broadcast %cst_12 : f32 to vector<1x64xf32>
    %21 = arith.addf %18, %20 : vector<1x64xf32>
    %22 = math.rsqrt %21 : vector<1x64xf32>
    %23 = arith.mulf %19, %22 : vector<1x64xf32>
    %24 = vector.broadcast %23 : vector<1x64xf32> to vector<8x64xf32>
    %25 = arith.mulf %13, %24 : vector<8x64xf32>
    %c0_13 = arith.constant 0 : index
    %c0_14 = arith.constant 0 : index
    %26 = vector.load %arg4[%c0_13, %c0_14] : memref<1x64xf32, #tpu.memory_space<vmem>>, vector<1x64xf32>
    %27 = vector.broadcast %26 : vector<1x64xf32> to vector<8x64xf32>
    %28 = arith.addf %25, %27 : vector<8x64xf32>
    %c0_15 = arith.constant 0 : index
    %c0_16 = arith.constant 0 : index
    %29 = vector.load %arg5[%c0_15, %c0_16] : memref<64x32xf32, #tpu.memory_space<vmem>>, vector<64x32xf32>
    %cst_17 = arith.constant dense<0.000000e+00> : vector<8x32xf32>
    %30 = tpu.matmul %28, %29, %cst_17 {dimension_numbers = #tpu.dot_dimension_numbers<[1], [0], [0], [1], [0, 0, 1, 1], [], []>} : vector<8x64xf32>, vector<64x32xf32>, vector<8x32xf32> -> vector<8x32xf32>
    %c0_18 = arith.constant 0 : index
    %c0_19 = arith.constant 0 : index
    %31 = vector.load %arg6[%c0_18, %c0_19] : memref<1x32xf32, #tpu.memory_space<vmem>>, vector<1x32xf32>
    %32 = vector.broadcast %31 : vector<1x32xf32> to vector<8x32xf32>
    %33 = arith.addf %30, %32 : vector<8x32xf32>
    %cst_20 = arith.constant 0.000000e+00 : f32
    %34 = vector.broadcast %cst_20 : f32 to vector<8x32xf32>
    %35 = arith.maximumf %33, %34 : vector<8x32xf32>
    %c0_21 = arith.constant 0 : index
    %c0_22 = arith.constant 0 : index
    %36 = vector.load %arg7[%c0_21, %c0_22] : memref<32x4xf32, #tpu.memory_space<vmem>>, vector<32x4xf32>
    %cst_23 = arith.constant dense<0.000000e+00> : vector<8x4xf32>
    %37 = tpu.matmul %35, %36, %cst_23 {dimension_numbers = #tpu.dot_dimension_numbers<[1], [0], [0], [1], [0, 0, 1, 1], [], []>} : vector<8x32xf32>, vector<32x4xf32>, vector<8x4xf32> -> vector<8x4xf32>
    %c0_24 = arith.constant 0 : index
    %c0_25 = arith.constant 0 : index
    %38 = vector.load %arg8[%c0_24, %c0_25] : memref<1x4xf32, #tpu.memory_space<vmem>>, vector<1x4xf32>
    %39 = vector.broadcast %38 : vector<1x4xf32> to vector<8x4xf32>
    %40 = arith.addf %37, %39 : vector<8x4xf32>
    %c0_26 = arith.constant 0 : index
    %c0_27 = arith.constant 0 : index
    %41 = vector.load %arg9[%c0_26, %c0_27] : memref<8x4xf32, #tpu.memory_space<vmem>>, vector<8x4xf32>
    tpu.vector_store %arg9[%c0_26, %c0_27], %40 {strides = array<i32>} : memref<8x4xf32, #tpu.memory_space<vmem>>, vector<8x4xf32>,
    return
  }
}

</mosaic_0001>

<llo_original>
// kernel: qnetwork_forward.1
$region0: #{qnetwork_forward.1}
  #allocation0 [shape = 'u32[]', space=smem, size = 0x4, offset = 0x4, fixed_abs, tag = 'smem constant byte address 0x4 - core index']
  #allocation1 [shape = 'u32[144,128]{1,0:T(1,128)}', space=vmem, size = 0x12000, scoped, tag = 'internal scratch']
  %s0 = inlined_call_operand.vmem [shape: f32[8,32], index: 0, kind: input, shape index: {}]
  %s1 = inlined_call_operand.vmem [shape: f32[32,64], index: 1, kind: input, shape index: {}]
  %s2 = inlined_call_operand.vmem [shape: f32[1,64], index: 2, kind: input, shape index: {}]
  %s3 = inlined_call_operand.vmem [shape: f32[1,64], index: 3, kind: input, shape index: {}]
  %s4 = inlined_call_operand.vmem [shape: f32[1,64], index: 4, kind: input, shape index: {}]
  %s5 = inlined_call_operand.vmem [shape: f32[64,32], index: 5, kind: input, shape index: {}]
  %s6 = inlined_call_operand.vmem [shape: f32[1,32], index: 6, kind: input, shape index: {}]
  %s7 = inlined_call_operand.vmem [shape: f32[32,4], index: 7, kind: input, shape index: {}]
  %s8 = inlined_call_operand.vmem [shape: f32[1,4], index: 8, kind: input, shape index: {}]
  %s9 = inlined_call_operand.vmem [shape: f32[8,4], index: 9, kind: output, shape index: {}]
  %s10 = sld [smem:[#allocation0]]
  $region46: #{qnetwork_forward.1} parent=0
    _
  %s12 = ssub.s32 1, %s10
  %s13 = scalar_select 0, %s12, %s10
  // Predicated region
  $region2: #{qnetwork_forward.1} parent=0 // pred_check
    _
  $region3: #{qnetwork_forward.1} parent=0 // pred_check_branch
    %15 = sbr.rel (0) target = $region5
  $region4: #{qnetwork_forward.1} parent=0 // pred_region
    _
  $region5: #{qnetwork_forward.1} parent=0 // pred_fallthru
    _
  // Predicated region
  $region6: #{qnetwork_forward.1} parent=0 // pred_check
    _
  $region7: #{qnetwork_forward.1} parent=0 // pred_check_branch
    %17 = sbr.rel (0) target = $region9
  $region8: #{qnetwork_forward.1} parent=0 // pred_region
    _
  $region9: #{qnetwork_forward.1} parent=0 // pred_fallthru
    _
  // Predicated region
  $region10: #{qnetwork_forward.1} parent=0 // pred_check
    _
  $region11: #{qnetwork_forward.1} parent=0 // pred_check_branch
    %19 = sbr.rel (0) target = $region13
  $region12: #{qnetwork_forward.1} parent=0 // pred_region
    _
  $region13: #{qnetwork_forward.1} parent=0 // pred_fallthru
    _
  // Predicated region
  $region14: #{qnetwork_forward.1} parent=0 // pred_check
    _
  $region15: #{qnetwork_forward.1} parent=0 // pred_check_branch
    %21 = sbr.rel (0) target = $region17
  $region16: #{qnetwork_forward.1} parent=0 // pred_region
    _
  $region17: #{qnetwork_forward.1} parent=0 // pred_fallthru
    _
  // Predicated region
  $region18: #{qnetwork_forward.1} parent=0 // pred_check
    _
  $region19: #{qnetwork_forward.1} parent=0 // pred_check_branch
    %23 = sbr.rel (0) target = $region21
  $region20: #{qnetwork_forward.1} parent=0 // pred_region
    _
  $region21: #{qnetwork_forward.1} parent=0 // pred_fallthru
    _
  // Predicated region
  $region22: #{qnetwork_forward.1} parent=0 // pred_check
    _
  $region23: #{qnetwork_forward.1} parent=0 // pred_check_branch
    %25 = sbr.rel (0) target = $region25
  $region24: #{qnetwork_forward.1} parent=0 // pred_region
    _
  $region25: #{qnetwork_forward.1} parent=0 // pred_fallthru
    _
  // Predicated region
  $region26: #{qnetwork_forward.1} parent=0 // pred_check
    _
  $region27: #{qnetwork_forward.1} parent=0 // pred_check_branch
    %27 = sbr.rel (0) target = $region29
  $region28: #{qnetwork_forward.1} parent=0 // pred_region
    _
  $region29: #{qnetwork_forward.1} parent=0 // pred_fallthru
    _
  // Predicated region
  $region30: #{qnetwork_forward.1} parent=0 // pred_check
    _
  $region31: #{qnetwork_forward.1} parent=0 // pred_check_branch
    %29 = sbr.rel (0) target = $region33
  $region32: #{qnetwork_forward.1} parent=0 // pred_region
    _
  $region33: #{qnetwork_forward.1} parent=0 // pred_fallthru
    _
  // Predicated region
  $region34: #{qnetwork_forward.1} parent=0 // pred_check
    _
  $region35: #{qnetwork_forward.1} parent=0 // pred_check_branch
    %31 = sbr.rel (0) target = $region37
  $region36: #{qnetwork_forward.1} parent=0 // pred_region
    _
  $region37: #{qnetwork_forward.1} parent=0 // pred_fallthru
    _
  %v32 = vld [vmem:[%s0] sm:$0xff]
  %v33 = vld [vmem:[%s1] sm:$0xff]
  %v34 = vld [vmem:[%s1 + $0x8] sm:$0xff]
  %v35 = vld [vmem:[%s1 + $0x10] sm:$0xff]
  %v36 = vld [vmem:[%s1 + $0x18] sm:$0xff]
  %v37 = vld [vmem:[%s2] sm:$0x1]
  %v39 = vlaneseq
  %v40 = vshrl.u32 %v39, 7
  %v41 = vsub.s32 0, %v40
  %v42 = vrot.slane %v37, %v41
  %vm44 = vcmask 261120
  %v46 = vsel %vm44, %v32, 0
  %48 = vmatprep.subr.mxu0 0.0
  %49 = vmatpush1.msra.mxu0 %v33
  %50 = vmatprep.subr.mxu0 0.0
  %51 = vmatpush1.msra.mxu0 %v34
  %52 = vmatprep.subr.mxu0 0.0
  %53 = vmatpush1.msra.mxu0 %v35
  %54 = vmatprep.subr.mxu0 0.0
  %55 = vmatpush1.msra.mxu0 %v36
  %56 = vmatprep.subr.mxu0 0.0
  %57 = vmatpush1.msra.mxu0 0.0
  %58 = vmatprep.subr.mxu0 0.0
  %59 = vmatpush1.msra.mxu0 0.0
  %60 = vmatprep.subr.mxu0 0.0
  %61 = vmatpush1.msra.mxu0 0.0
  %62 = vmatprep.subr.mxu0 0.0
  %63 = vmatpush1.msra.mxu0 0.0
  %64 = vmatprep.subr.mxu0 0.0
  %65 = vmatpush1.msra.mxu0 0.0
  %66 = vmatprep.subr.mxu0 0.0
  %67 = vmatpush1.msra.mxu0 0.0
  %68 = vmatprep.subr.mxu0 0.0
  %69 = vmatpush1.msra.mxu0 0.0
  %70 = vmatprep.subr.mxu0 0.0
  %71 = vmatpush1.msra.mxu0 0.0
  %72 = vmatprep.subr.mxu0 0.0
  %73 = vmatpush1.msra.mxu0 0.0
  %74 = vmatprep.subr.mxu0 0.0
  %75 = vmatpush1.msra.mxu0 0.0
  %76 = vmatprep.subr.mxu0 0.0
  %77 = vmatpush1.msra.mxu0 0.0
  %78 = vmatprep.subr.mxu0 0.0
  %79 = vmatpush1.msra.mxu0 0.0
  %80 = vmatprep.subr.mxu0 0.0
  %81 = vmatpush1.msra.mxu0 0.0
  %82 = vmatprep.subr.mxu0 0.0
  %83 = vmatpush1.msra.mxu0 0.0
  %84 = vmatprep.subr.mxu0 0.0
  %85 = vmatpush1.msra.mxu0 0.0
  %86 = vmatprep.subr.mxu0 0.0
  %87 = vmatpush1.msra.mxu0 0.0
  %88 = vmatprep.subr.mxu0 0.0
  %89 = vmatpush1.msra.mxu0 0.0
  %90 = vmatprep.subr.mxu0 0.0
  %91 = vmatpush1.msra.mxu0 0.0
  %92 = vmatprep.subr.mxu0 0.0
  %93 = vmatpush1.msra.mxu0 0.0
  %94 = vmatprep.subr.mxu0 0.0
  %95 = vmatpush1.msra.mxu0 0.0
  %96 = vmatprep.subr.mxu0 0.0
  %97 = vmatpush1.msra.mxu0 0.0
  %98 = vmatprep.subr.mxu0 0.0
  %99 = vmatpush1.msra.mxu0 0.0
  %100 = vmatprep.subr.mxu0 0.0
  %101 = vmatpush1.msra.mxu0 0.0
  %102 = vmatprep.subr.mxu0 0.0
  %103 = vmatpush1.msra.mxu0 0.0
  %104 = vmatprep.subr.mxu0 0.0
  %105 = vmatpush1.msra.mxu0 0.0
  %106 = vmatprep.subr.mxu0 0.0
  %107 = vmatpush1.msra.mxu0 0.0
  %108 = vmatprep.subr.mxu0 0.0
  %109 = vmatpush1.msra.mxu0 0.0
  %110 = vmatprep.subr.mxu0 0.0
  %111 = vmatpush1.msra.mxu0 0.0
  %112 = vmatprep.mubr.f32.mxu0 0.0
  %113 = vmatmul.mubr.f32.gmra.mrb[0].mxu0 %v46
  %v114 = vpop.f32.mrb[0].mxu0
  %v115 = vadd.f32 %v42, %v114
  %v116 = vpop.f32.mrb[0].mxu0
  %117 = vdwg.mxu0
  %v118 = vmax.f32 %v115, 0.0
  %vm119 = vcmask 523264
  %v120 = vsel %vm119, %v118, 0.0
  %v121 = vrot.slane %v120, 4
  %v122 = vadd.f32 %v120, %v121
  %v123 = vrot.slane %v122, 2
  %v124 = vadd.f32 %v122, %v123
  %v125 = vrot.slane %v124, 1
  %v126 = vadd.f32 %v124, %v125
  %v127 = vrcp.pop 8.0
  %v128 = vmul.f32 %v126, %v127
  %v129 = vsub.f32 %v118, %v128
  %v130 = vmul.f32 %v129, %v129
  %v131 = vsel %vm119, %v130, 0.0
  %v132 = vrot.slane %v131, 4
  %v133 = vadd.f32 %v131, %v132
  %v134 = vrot.slane %v133, 2
  %v135 = vadd.f32 %v133, %v134
  %v136 = vrot.slane %v135, 1
  %v137 = vadd.f32 %v135, %v136
  %v138 = vmul.f32 %v137, %v127
  %v139 = vld [vmem:[%s3] sm:$0x1]
  %v140 = vadd.f32 %v138, 1e-05
  %v141 = vrsqrt.pop %v140
  %v142 = vmul.f32 %v139, %v141
  %v144 = vlaneseq
  %v145 = vshrl.u32 %v144, 7
  %v146 = vsub.s32 0, %v145
  %v147 = vrot.slane %v142, %v146
  %v149 = vmul.f32 %v129, %v147
  %v150 = vld [vmem:[%s4] sm:$0x1]
  %v152 = vlaneseq
  %v153 = vshrl.u32 %v152, 7
  %v154 = vsub.s32 0, %v153
  %v155 = vrot.slane %v150, %v154
  %v157 = vadd.f32 %v149, %v155
  %v158 = vld [vmem:[%s5] sm:$0xff]
  %v159 = vld [vmem:[%s5 + $0x8] sm:$0xff]
  %v160 = vld [vmem:[%s5 + $0x10] sm:$0xff]
  %v161 = vld [vmem:[%s5 + $0x18] sm:$0xff]
  %v162 = vld [vmem:[%s5 + $0x20] sm:$0xff]
  %v163 = vld [vmem:[%s5 + $0x28] sm:$0xff]
  %v164 = vld [vmem:[%s5 + $0x30] sm:$0xff]
  %v165 = vld [vmem:[%s5 + $0x38] sm:$0xff]
  %v166 = vld [vmem:[%s6] sm:$0x1]
  %v168 = vlaneseq
  %v169 = vshrl.u32 %v168, 7
  %v170 = vsub.s32 0, %v169
  %v171 = vrot.slane %v166, %v170
  %v174 = vsel %vm119, %v157, 0
  %176 = vmatprep.subr.mxu0 0.0
  %177 = vmatpush1.msra.mxu0 %v158
  %178 = vmatprep.subr.mxu0 0.0
  %179 = vmatpush1.msra.mxu0 %v159
  %180 = vmatprep.subr.mxu0 0.0
  %181 = vmatpush1.msra.mxu0 %v160
  %182 = vmatprep.subr.mxu0 0.0
  %183 = vmatpush1.msra.mxu0 %v161
  %184 = vmatprep.subr.mxu0 0.0
  %185 = vmatpush1.msra.mxu0 %v162
  %186 = vmatprep.subr.mxu0 0.0
  %187 = vmatpush1.msra.mxu0 %v163
  %188 = vmatprep.subr.mxu0 0.0
  %189 = vmatpush1.msra.mxu0 %v164
  %190 = vmatprep.subr.mxu0 0.0
  %191 = vmatpush1.msra.mxu0 %v165
  %192 = vmatprep.subr.mxu0 0.0
  %193 = vmatpush1.msra.mxu0 0.0
  %194 = vmatprep.subr.mxu0 0.0
  %195 = vmatpush1.msra.mxu0 0.0
  %196 = vmatprep.subr.mxu0 0.0
  %197 = vmatpush1.msra.mxu0 0.0
  %198 = vmatprep.subr.mxu0 0.0
  %199 = vmatpush1.msra.mxu0 0.0
  %200 = vmatprep.subr.mxu0 0.0
  %201 = vmatpush1.msra.mxu0 0.0
  %202 = vmatprep.subr.mxu0 0.0
  %203 = vmatpush1.msra.mxu0 0.0
  %204 = vmatprep.subr.mxu0 0.0
  %205 = vmatpush1.msra.mxu0 0.0
  %206 = vmatprep.subr.mxu0 0.0
  %207 = vmatpush1.msra.mxu0 0.0
  %208 = vmatprep.subr.mxu0 0.0
  %209 = vmatpush1.msra.mxu0 0.0
  %210 = vmatprep.subr.mxu0 0.0
  %211 = vmatpush1.msra.mxu0 0.0
  %212 = vmatprep.subr.mxu0 0.0
  %213 = vmatpush1.msra.mxu0 0.0
  %214 = vmatprep.subr.mxu0 0.0
  %215 = vmatpush1.msra.mxu0 0.0
  %216 = vmatprep.subr.mxu0 0.0
  %217 = vmatpush1.msra.mxu0 0.0
  %218 = vmatprep.subr.mxu0 0.0
  %219 = vmatpush1.msra.mxu0 0.0
  %220 = vmatprep.subr.mxu0 0.0
  %221 = vmatpush1.msra.mxu0 0.0
  %222 = vmatprep.subr.mxu0 0.0
  %223 = vmatpush1.msra.mxu0 0.0
  %224 = vmatprep.subr.mxu0 0.0
  %225 = vmatpush1.msra.mxu0 0.0
  %226 = vmatprep.subr.mxu0 0.0
  %227 = vmatpush1.msra.mxu0 0.0
  %228 = vmatprep.subr.mxu0 0.0
  %229 = vmatpush1.msra.mxu0 0.0
  %230 = vmatprep.subr.mxu0 0.0
  %231 = vmatpush1.msra.mxu0 0.0
  %232 = vmatprep.subr.mxu0 0.0
  %233 = vmatpush1.msra.mxu0 0.0
  %234 = vmatprep.subr.mxu0 0.0
  %235 = vmatpush1.msra.mxu0 0.0
  %236 = vmatprep.subr.mxu0 0.0
  %237 = vmatpush1.msra.mxu0 0.0
  %238 = vmatprep.subr.mxu0 0.0
  %239 = vmatpush1.msra.mxu0 0.0
  %240 = vmatprep.mubr.f32.mxu0 0.0
  %241 = vmatmul.mubr.f32.gmra.mrb[0].mxu0 %v174
  %v242 = vpop.f32.mrb[0].mxu0
  %v243 = vadd.f32 %v171, %v242
  %v244 = vpop.f32.mrb[0].mxu0
  %245 = vdwg.mxu0
  %v246 = vmax.f32 %v243, 0.0
  %v247 = vld [vmem:[%s7] sm:$0xff]
  %v248 = vld [vmem:[%s7 + $0x8] sm:$0xff]
  %v249 = vld [vmem:[%s7 + $0x10] sm:$0xff]
  %v250 = vld [vmem:[%s7 + $0x18] sm:$0xff]
  %v251 = vld [vmem:[%s8] sm:$0x1]
  %v253 = vlaneseq
  %v254 = vshrl.u32 %v253, 7
  %v255 = vsub.s32 0, %v254
  %v256 = vrot.slane %v251, %v255
  %v259 = vsel %vm44, %v246, 0
  %261 = vmatprep.subr.mxu0 0.0
  %262 = vmatpush1.msra.mxu0 %v247
  %263 = vmatprep.subr.mxu0 0.0
  %264 = vmatpush1.msra.mxu0 %v248
  %265 = vmatprep.subr.mxu0 0.0
  %266 = vmatpush1.msra.mxu0 %v249
  %267 = vmatprep.subr.mxu0 0.0
  %268 = vmatpush1.msra.mxu0 %v250
  %269 = vmatprep.subr.mxu0 0.0
  %270 = vmatpush1.msra.mxu0 0.0
  %271 = vmatprep.subr.mxu0 0.0
  %272 = vmatpush1.msra.mxu0 0.0
  %273 = vmatprep.subr.mxu0 0.0
  %274 = vmatpush1.msra.mxu0 0.0
  %275 = vmatprep.subr.mxu0 0.0
  %276 = vmatpush1.msra.mxu0 0.0
  %277 = vmatprep.subr.mxu0 0.0
  %278 = vmatpush1.msra.mxu0 0.0
  %279 = vmatprep.subr.mxu0 0.0
  %280 = vmatpush1.msra.mxu0 0.0
  %281 = vmatprep.subr.mxu0 0.0
  %282 = vmatpush1.msra.mxu0 0.0
  %283 = vmatprep.subr.mxu0 0.0
  %284 = vmatpush1.msra.mxu0 0.0
  %285 = vmatprep.subr.mxu0 0.0
  %286 = vmatpush1.msra.mxu0 0.0
  %287 = vmatprep.subr.mxu0 0.0
  %288 = vmatpush1.msra.mxu0 0.0
  %289 = vmatprep.subr.mxu0 0.0
  %290 = vmatpush1.msra.mxu0 0.0
  %291 = vmatprep.subr.mxu0 0.0
  %292 = vmatpush1.msra.mxu0 0.0
  %293 = vmatprep.subr.mxu0 0.0
  %294 = vmatpush1.msra.mxu0 0.0
  %295 = vmatprep.subr.mxu0 0.0
  %296 = vmatpush1.msra.mxu0 0.0
  %297 = vmatprep.subr.mxu0 0.0
  %298 = vmatpush1.msra.mxu0 0.0
  %299 = vmatprep.subr.mxu0 0.0
  %300 = vmatpush1.msra.mxu0 0.0
  %301 = vmatprep.subr.mxu0 0.0
  %302 = vmatpush1.msra.mxu0 0.0
  %303 = vmatprep.subr.mxu0 0.0
  %304 = vmatpush1.msra.mxu0 0.0
  %305 = vmatprep.subr.mxu0 0.0
  %306 = vmatpush1.msra.mxu0 0.0
  %307 = vmatprep.subr.mxu0 0.0
  %308 = vmatpush1.msra.mxu0 0.0
  %309 = vmatprep.subr.mxu0 0.0
  %310 = vmatpush1.msra.mxu0 0.0
  %311 = vmatprep.subr.mxu0 0.0
  %312 = vmatpush1.msra.mxu0 0.0
  %313 = vmatprep.subr.mxu0 0.0
  %314 = vmatpush1.msra.mxu0 0.0
  %315 = vmatprep.subr.mxu0 0.0
  %316 = vmatpush1.msra.mxu0 0.0
  %317 = vmatprep.subr.mxu0 0.0
  %318 = vmatpush1.msra.mxu0 0.0
  %319 = vmatprep.subr.mxu0 0.0
  %320 = vmatpush1.msra.mxu0 0.0
  %321 = vmatprep.subr.mxu0 0.0
  %322 = vmatpush1.msra.mxu0 0.0
  %323 = vmatprep.subr.mxu0 0.0
  %324 = vmatpush1.msra.mxu0 0.0
  %325 = vmatprep.mubr.f32.mxu0 0.0
  %326 = vmatmul.mubr.f32.gmra.mrb[0].mxu0 %v259
  %v327 = vpop.f32.mrb[0].mxu0
  %v328 = vadd.f32 %v256, %v327
  %v329 = vpop.f32.mrb[0].mxu0
  %330 = vdwg.mxu0
  %vm331 = vcmask 31744
  %332 = vst.msk [vmem:[%s9] sm:$0xff] %vm331, %v328
  // Predicated region
  $region38: #{qnetwork_forward.1} parent=0 // pred_check
    _
  $region39: #{qnetwork_forward.1} parent=0 // pred_check_branch
    %334 = sbr.rel (0) target = $region41
  $region40: #{qnetwork_forward.1} parent=0 // pred_region
    _
  $region41: #{qnetwork_forward.1} parent=0 // pred_fallthru
    _
  // Predicated region
  $region42: #{qnetwork_forward.1} parent=0 // pred_check
    _
  $region43: #{qnetwork_forward.1} parent=0 // pred_check_branch
    %336 = sbr.rel (0) target = $region45
  $region44: #{qnetwork_forward.1} parent=0 // pred_region
    _
  $region45: #{qnetwork_forward.1} parent=0 // pred_fallthru
    _

</llo_original>
